<compile_context>
chip_gen: v6e
topology: v6e:2x2x1
jax: 0.10.0
libtpu: 0.0.40
codegen_flags: <defaults>
</compile_context>

<pallas_src>
import jax
import jax.numpy as jnp
from jax.experimental import pallas as pl
from jax.experimental.pallas import tpu as pltpu

_LANE = 128


# ---------------------------------------------------------------------------
# Tiling plan
# ---------------------------------------------------------------------------
def _round_up(x, m):
    return ((x + m - 1) // m) * m


def _vmem_capacity_bytes():
    """Physical VMEM if queryable; otherwise the v7x-safe 64 MiB floor."""
    try:
        info = pltpu.get_tpu_info()
        cap = getattr(info, "vmem_capacity_bytes", None)
        if cap:
            return int(cap)
    except Exception:
        pass
    return 64 * 1024 * 1024


def _plan(c, hw, itemsize, tile_cols=None, num_parallel=None):
    """Returns (tk, n_par, n_k, n_total, needs_mask, has_phantom)."""
    cap = _vmem_capacity_bytes()
    # Budget for the double-buffered feature tile; leave room for the (C,C)
    # output blocks, semaphores and compiler-internal scratch.
    usable = max(int(cap * 0.7) - 8 * c * c * 4, 4 << 20)

    if tile_cols is None:
        tk_cap = max(_LANE, (usable // (2 * c * itemsize)) // _LANE * _LANE)
    else:
        tk_cap = int(tile_cols)

    n_total = pl.cdiv(hw, tk_cap)
    if n_total == 1:
        tk = hw                          # single full-dim block: zero padding
    elif tile_cols is None:
        # Divisor-aware tile size: per-run padding stays < 128 columns.
        tk = _round_up(pl.cdiv(hw, n_total), _LANE)
        n_total = pl.cdiv(hw, tk)
    else:
        assert tile_cols % _LANE == 0, "tile_cols must be a multiple of 128"
        tk = int(tile_cols)

    if num_parallel is None:
        # Two partial Grams keep both v7x TensorCores busy; essentially free
        # on single-core chips (one extra (C,C) buffer + tiny JAX sum).
        n_par = 2 if n_total >= 2 else 1
    else:
        n_par = max(1, min(int(num_parallel), n_total))

    n_k = pl.cdiv(n_total, n_par)
    needs_mask = (n_par * n_k * tk) != hw
    has_phantom = (n_par * n_k) > n_total
    return tk, n_par, n_k, n_total, needs_mask, has_phantom


# ---------------------------------------------------------------------------
# Kernel
# ---------------------------------------------------------------------------
def _make_partial_gram_kernel(c, hw, tk, n_k, needs_mask, compute_dtype):
    """Accumulates F_tile @ F_tile^T into the resident (1, C, C) output block."""

    def kernel(feat_ref, out_ref):
        p = pl.program_id(0)
        k = pl.program_id(1)

        @pl.when(k == 0)
        def _init():
            out_ref[...] = jnp.zeros_like(out_ref)

        f = feat_ref[...]
        if needs_mask:
            # Global tile index; zero out columns past H*W (covers both the
            # ragged tail of the last real tile and any clamped phantom tile).
            t = p * n_k + k
            col = t * tk + jax.lax.broadcasted_iota(jnp.int32, f.shape, 1)
            f = jnp.where(col < hw, f, jnp.zeros_like(f))
        if compute_dtype is not None:
            f = f.astype(compute_dtype)

        # Contract the last dim of both operands: (C, tk) x (C, tk) -> (C, C).
        acc = jax.lax.dot_general(
            f, f,
            dimension_numbers=(((1,), (1,)), ((), ())),
            preferred_element_type=jnp.float32,
        )
        out_ref[...] += acc[None]

    return kernel


# ---------------------------------------------------------------------------
# Wrappers
# ---------------------------------------------------------------------------
def gram_matrix_pallas(x, *, compute_dtype=None, tile_cols=None, num_parallel=None):
    """x: (1, C, H, W) -> Gram matrix (C, C) float32, matching PyTorch gram_matrix."""
    n, c, h, w = x.shape
    assert n == 1, "gram_matrix semantics require batch size 1"
    hw = h * w
    feats = x.reshape(c, hw)                       # merge dims only: no HBM copy
    itemsize = feats.dtype.itemsize

    tk, n_par, n_k, n_total, needs_mask, has_phantom = _plan(
        c, hw, itemsize, tile_cols, num_parallel)

    if has_phantom:
        # Clamp phantom tiles (parallel split overshoot) onto the last real
        # block; their contribution is zeroed by the in-kernel column mask.
        def feat_index_map(p, k):
            return (0, jnp.minimum(p * n_k + k, n_total - 1))
    else:
        def feat_index_map(p, k):
            return (0, p * n_k + k)

    kernel = _make_partial_gram_kernel(c, hw, tk, n_k, needs_mask, compute_dtype)

    cap = _vmem_capacity_bytes()
    need = 2 * c * tk * itemsize + 4 * c * c * 4
    vmem_limit = max(8 << 20, min(int(cap * 0.9), int(need * 1.4) + (2 << 20)))

    cost = pl.CostEstimate(
        flops=2 * c * c * hw,
        transcendentals=0,
        bytes_accessed=c * hw * itemsize + n_par * c * c * 4,
    )

    partials = pl.pallas_call(
        kernel,
        out_shape=jax.ShapeDtypeStruct((n_par, c, c), jnp.float32),
        grid=(n_par, n_k),
        in_specs=[pl.BlockSpec((c, tk), feat_index_map)],
        out_specs=pl.BlockSpec((1, c, c), lambda p, k: (p, 0, 0)),
        compiler_params=pltpu.CompilerParams(
            dimension_semantics=("parallel", "arbitrary"),
            vmem_limit_bytes=vmem_limit,
        ),
        cost_estimate=cost,
    )(feats)

    # Tiny (C, C) epilogue: sum the per-core partials and apply 1/(C*H*W).
    return jnp.sum(partials, axis=0) * (1.0 / float(c * hw))


def style_loss_forward_pallas(x, target_gram, **kwargs):
    """Returns (G, loss) with G = gram(x) and loss = mse(G, target_gram)."""
    g = gram_matrix_pallas(x, **kwargs)
    diff = g - target_gram.astype(jnp.float32)
    loss = jnp.mean(diff * diff)
    return g, loss


class StyleLoss:
    """JAX/Pallas port of the PyTorch StyleLoss module.

    __init__ stores gram_matrix(target_feature) (detached); __call__ computes
    the MSE between gram_matrix(input) and the stored target, stashes it in
    `self.loss`, and returns the input unchanged (pass-through).
    """

    def __init__(self, target_feature, *, compute_dtype=None):
        self._compute_dtype = compute_dtype
        self.target = jax.lax.stop_gradient(
            gram_matrix_pallas(target_feature, compute_dtype=compute_dtype))
        self.loss = None

    def __call__(self, x):
        _, loss = style_loss_forward_pallas(
            x, self.target, compute_dtype=self._compute_dtype)
        self.loss = loss
        return x


# ---------------------------------------------------------------------------
# Pure-JAX reference (for correctness check)
# ---------------------------------------------------------------------------
def gram_matrix_ref(x):
    n, c, h, w = x.shape
    assert n == 1
    feats = x.reshape(c, h * w)
    return (feats @ feats.T) / (c * h * w)


if __name__ == "__main__":
    key = jax.random.PRNGKey(0)
    k1, k2, k3, k4, k5, k6 = jax.random.split(key, 6)

    # Case 1: batch=1 (required by gram_matrix), C=8, 16x16 spatial (HW=256).
    tgt1 = jax.random.normal(k1, (1, 8, 16, 16), dtype=jnp.float32)
    x1 = jax.random.normal(k2, (1, 8, 16, 16), dtype=jnp.float32)
    m1 = StyleLoss(tgt1)
    out1 = jax.block_until_ready(m1(x1))
    loss1 = jax.block_until_ready(m1.loss)
    ref1 = jnp.mean((gram_matrix_ref(x1) - gram_matrix_ref(tgt1)) ** 2)
    assert out1.shape == x1.shape and bool(jnp.all(out1 == x1)), "must return input"
    assert jnp.allclose(loss1, ref1, rtol=2e-5, atol=1e-5), (loss1, ref1)

    # Case 2: HW=144 (not a multiple of 128) -> single full-dim block, no padding.
    tgt2 = jax.random.normal(k3, (1, 16, 12, 12), dtype=jnp.float32)
    x2 = jax.random.normal(k4, (1, 16, 12, 12), dtype=jnp.float32)
    m2 = StyleLoss(tgt2)
    out2 = jax.block_until_ready(m2(x2))
    loss2 = jax.block_until_ready(m2.loss)
    ref2 = jnp.mean((gram_matrix_ref(x2) - gram_matrix_ref(tgt2)) ** 2)
    assert bool(jnp.all(out2 == x2))
    assert jnp.allclose(loss2, ref2, rtol=2e-5, atol=1e-5), (loss2, ref2)

    # Case 3: forced 128-col tiles -> exact 2-way parallel split, no masking.
    x3 = jax.random.normal(k5, (1, 8, 16, 16), dtype=jnp.float32)
    g3 = jax.block_until_ready(gram_matrix_pallas(x3, tile_cols=128, num_parallel=2))
    assert jnp.allclose(g3, gram_matrix_ref(x3), rtol=2e-5, atol=1e-5)

    # Case 4: HW=320, 3 tiles of 128 split 2 ways -> ragged tail + clamped
    # phantom tile, exercising the in-kernel column mask.
    x4 = jax.random.normal(k6, (1, 16, 8, 40), dtype=jnp.float32)
    g4 = jax.block_until_ready(gram_matrix_pallas(x4, tile_cols=128, num_parallel=2))
    assert jnp.allclose(g4, gram_matrix_ref(x4), rtol=2e-5, atol=1e-5)

    print("KERNEL_OK")
</pallas_src>

<mosaic_0001>
module attributes {stable_mosaic.version = 11 : i64} {
  func.func @kernel(%arg0: i32, %arg1: i32, %arg2: memref<8x256xf32, #tpu.memory_space<vmem>>, %arg3: memref<1x8x8xf32, #tpu.memory_space<vmem>>) attributes {dimension_semantics = [#tpu.dimension_semantics<parallel>, #tpu.dimension_semantics<arbitrary>], iteration_bounds = array<i64: 1, 1>, scalar_prefetch = 0 : i64, scratch_operands = 0 : i64, tpu.core_type = #tpu.core_type<tc>, window_params = [{transform_indices = @transform_0, window_bounds = array<i64: 8, 256>}, {transform_indices = @transform_1, window_bounds = array<i64: 1, 8, 8>}]} {
    %c0_i32 = arith.constant 0 : i32
    %0 = arith.cmpi eq, %arg1, %c0_i32 : i32
    %1 = arith.extui %0 : i1 to i32
    %c0_i32_0 = arith.constant 0 : i32
    %2 = arith.cmpi ne, %1, %c0_i32_0 : i32
    scf.if %2 {
      %cst_8 = arith.constant 0.000000e+00 : f32
      %9 = vector.broadcast %cst_8 : f32 to vector<1x8x8xf32>
      %c0_9 = arith.constant 0 : index
      %c0_10 = arith.constant 0 : index
      %c0_11 = arith.constant 0 : index
      %10 = vector.load %arg3[%c0_9, %c0_10, %c0_11] : memref<1x8x8xf32, #tpu.memory_space<vmem>>, vector<1x8x8xf32>
      tpu.vector_store %arg3[%c0_9, %c0_10, %c0_11], %9 {strides = array<i32>} : memref<1x8x8xf32, #tpu.memory_space<vmem>>, vector<1x8x8xf32>,
    } else {
    }
    %c0 = arith.constant 0 : index
    %c0_1 = arith.constant 0 : index
    %3 = vector.load %arg2[%c0, %c0_1] : memref<8x256xf32, #tpu.memory_space<vmem>>, vector<8x256xf32>
    %cst = arith.constant dense<0.000000e+00> : vector<8x8xf32>
    %4 = tpu.matmul %3, %3, %cst {dimension_numbers = #tpu.dot_dimension_numbers<[1], [1], [0], [0], [0, 0, 1, 0], [], []>} : vector<8x256xf32>, vector<8x256xf32>, vector<8x8xf32> -> vector<8x8xf32>
    %c0_2 = arith.constant 0 : index
    %c0_3 = arith.constant 0 : index
    %c0_4 = arith.constant 0 : index
    %5 = vector.load %arg3[%c0_2, %c0_3, %c0_4] : memref<1x8x8xf32, #tpu.memory_space<vmem>>, vector<1x8x8xf32>
    %6 = vector.shape_cast %4 : vector<8x8xf32> to vector<1x8x8xf32>
    %7 = arith.addf %5, %6 : vector<1x8x8xf32>
    %c0_5 = arith.constant 0 : index
    %c0_6 = arith.constant 0 : index
    %c0_7 = arith.constant 0 : index
    %8 = vector.load %arg3[%c0_5, %c0_6, %c0_7] : memref<1x8x8xf32, #tpu.memory_space<vmem>>, vector<1x8x8xf32>
    tpu.vector_store %arg3[%c0_5, %c0_6, %c0_7], %7 {strides = array<i32>} : memref<1x8x8xf32, #tpu.memory_space<vmem>>, vector<1x8x8xf32>,
    return
  }
  func.func @transform_0(%arg0: i32, %arg1: i32) -> (i32, i32) {
    %c1_i32 = arith.constant 1 : i32
    %0 = arith.muli %arg0, %c1_i32 : i32
    %1 = arith.addi %0, %arg1 : i32
    %c0_i32 = arith.constant 0 : i32
    %c0_i32_0 = arith.constant 0 : i32
    return %c0_i32, %1 : i32, i32
  }
  func.func @transform_1(%arg0: i32, %arg1: i32) -> (i32, i32, i32) {
    %c0_i32 = arith.constant 0 : i32
    %c0_i32_0 = arith.constant 0 : i32
    %c0_i32_1 = arith.constant 0 : i32
    return %arg0, %c0_i32, %c0_i32_0 : i32, i32, i32
  }
}

</mosaic_0001>

<llo_original>
// kernel: tpu_custom_call.1
$region0: #{tpu_custom_call.1}
  #allocation0 [shape = 'u32[]', space=smem, size = 0x4, offset = 0x4, fixed_abs, tag = 'smem constant byte address 0x4 - core index']
  #allocation1 [shape = 'u32[144,128]{1,0:T(1,128)}', space=vmem, size = 0x12000, scoped, tag = 'internal scratch']
  %s0 = inlined_call_operand.hbm [shape: f32[8,256], index: 0, kind: input, shape index: {}]
  %s1 = inlined_call_operand.hbm [shape: f32[1,8,8], index: 1, kind: output, shape index: {}]
  %s2 = sld [smem:[#allocation0]]
  $region22: #{tpu_custom_call.1} parent=0
    _
  %s4 = ssub.s32 1, %s2
  %s5 = scalar_select 0, %s4, %s2
  $region1: #{tpu_custom_call.1} parent=0
    #allocation2 [shape = 'u8[8192]{0}', space=vmem, size = 0x2000, scoped, tag = 'input window, operand 0, single buffered']
    #allocation3 [shape = 's32[1]{0}', space=sflag, size = 0x4, scoped, tag = 'scoped memory for tpu_custom_call.1']
    #allocation4 [shape = 's32[1]{0}', space=sflag, size = 0x4, scoped, tag = 'scoped memory for tpu_custom_call.1']
    #allocation5 [shape = 'u8[4096]{0}', space=vmem, size = 0x1000, scoped, tag = 'output window, operand 0, single buffered']
    %6 = vsyncpa [#allocation3], 0
    %7 = vsyncpa [#allocation4], 0
    // Predicated region
    $region2: #{tpu_custom_call.1} parent=1 // pred_check
      _
    $region3: #{tpu_custom_call.1} parent=1 // pred_check_branch
      %9 = sbr.rel (0) target = $region5
    $region4: #{tpu_custom_call.1} parent=1 // pred_region
      %s10 = sadd.s32 0, 0
      %s11 = smul.u32 2, %s10
      %s13 = ssub.s32 256, 256
      %14 = vsyncadd [#allocation3], %s13
      %s15 = smul.addr %s11, 128
      %s16 = scalar_lea.hbm %s0, %s15
      %s18 = sshll.u32 [#allocation2], 4
      %s19 = int_to_ptr.vmem [resolvable:$true] %s18
      %21 = dma.hbm_to_vmem [thread:$0]  %s16, 256, %s19, [#allocation3]
    $region5: #{tpu_custom_call.1} parent=1 // pred_fallthru
      _
    // Predicated region
    $region6: #{tpu_custom_call.1} parent=1 // pred_check
      _
    $region7: #{tpu_custom_call.1} parent=1 // pred_check_branch
      %23 = sbr.rel (0) target = $region9
    $region8: #{tpu_custom_call.1} parent=1 // pred_region
      %24 = dma.done [#allocation3], 256
    $region9: #{tpu_custom_call.1} parent=1 // pred_fallthru
      _
    %s25 = sadd.s32 0, 0
    %s26 = smul.u32 2, %s25
    %p27 = scmp.eq.s32.totalorder 0, 0
    // Predicated region
    $region10: #{tpu_custom_call.1} parent=1 // pred_check
      %p28 = pneg %p27
    $region11: #{tpu_custom_call.1} parent=1 // pred_check_branch
      %30 = sbr.rel (%p28) target = $region13
    $region12: #{tpu_custom_call.1} parent=1 // pred_region
      %vm31 = vcmask 64512
      %32 = vst.msk [vmem:[#allocation5] sm:$0xff] %vm31, 0.0
    $region13: #{tpu_custom_call.1} parent=1 // pred_fallthru
      _
    %v33 = vld [vmem:[#allocation2] sm:$0xff]
    %v34 = vld [vmem:[#allocation2 + $0x8] sm:$0xff]
    %35 = vmatprep.subr.mxu0 0.0
    %36 = vmatpush1.xpose.msra.mxu0 0.0
    %37 = vmatprep.subr.mxu0 0.0
    %38 = vmatpush1.xpose.msra.mxu0 0.0
    %39 = vmatprep.subr.mxu0 0.0
    %40 = vmatpush1.xpose.msra.mxu0 0.0
    %41 = vmatprep.subr.mxu0 0.0
    %42 = vmatpush1.xpose.msra.mxu0 0.0
    %43 = vmatprep.subr.mxu0 0.0
    %44 = vmatpush1.xpose.msra.mxu0 0.0
    %45 = vmatprep.subr.mxu0 0.0
    %46 = vmatpush1.xpose.msra.mxu0 0.0
    %47 = vmatprep.subr.mxu0 0.0
    %48 = vmatpush1.xpose.msra.mxu0 0.0
    %49 = vmatprep.subr.mxu0 0.0
    %50 = vmatpush1.xpose.msra.mxu0 0.0
    %51 = vmatprep.subr.mxu0 0.0
    %52 = vmatpush1.xpose.msra.mxu0 0.0
    %53 = vmatprep.subr.mxu0 0.0
    %54 = vmatpush1.xpose.msra.mxu0 0.0
    %55 = vmatprep.subr.mxu0 0.0
    %56 = vmatpush1.xpose.msra.mxu0 0.0
    %57 = vmatprep.subr.mxu0 0.0
    %58 = vmatpush1.xpose.msra.mxu0 0.0
    %59 = vmatprep.subr.mxu0 0.0
    %60 = vmatpush1.xpose.msra.mxu0 0.0
    %61 = vmatprep.subr.mxu0 0.0
    %62 = vmatpush1.xpose.msra.mxu0 0.0
    %63 = vmatprep.subr.mxu0 0.0
    %64 = vmatpush1.xpose.msra.mxu0 0.0
    %65 = vmatprep.subr.mxu0 %v34
    %66 = vmatpush1.xpose.msra.mxu0 %v33
    %67 = vmatprep.subr.mxu0 0.0
    %68 = vmatpush2.xpose.msra.mxu0 0.0
    %69 = vmatprep.subr.mxu0 0.0
    %70 = vmatpush2.xpose.msra.mxu0 0.0
    %71 = vmatprep.subr.mxu0 0.0
    %72 = vmatpush2.xpose.msra.mxu0 0.0
    %73 = vmatprep.subr.mxu0 0.0
    %74 = vmatpush2.xpose.msra.mxu0 0.0
    %75 = vmatprep.subr.mxu0 0.0
    %76 = vmatpush2.xpose.msra.mxu0 0.0
    %77 = vmatprep.subr.mxu0 0.0
    %78 = vmatpush2.xpose.msra.mxu0 0.0
    %79 = vmatprep.subr.mxu0 0.0
    %80 = vmatpush2.xpose.msra.mxu0 0.0
    %81 = vmatprep.subr.mxu0 0.0
    %82 = vmatpush2.xpose.msra.mxu0 0.0
    %83 = vmatprep.subr.mxu0 0.0
    %84 = vmatpush2.xpose.msra.mxu0 0.0
    %85 = vmatprep.subr.mxu0 0.0
    %86 = vmatpush2.xpose.msra.mxu0 0.0
    %87 = vmatprep.subr.mxu0 0.0
    %88 = vmatpush2.xpose.msra.mxu0 0.0
    %89 = vmatprep.subr.mxu0 0.0
    %90 = vmatpush2.xpose.msra.mxu0 0.0
    %91 = vmatprep.subr.mxu0 0.0
    %92 = vmatpush2.xpose.msra.mxu0 0.0
    %93 = vmatprep.subr.mxu0 0.0
    %94 = vmatpush2.xpose.msra.mxu0 0.0
    %95 = vmatprep.subr.mxu0 0.0
    %96 = vmatpush2.xpose.msra.mxu0 0.0
    %97 = vmatprep.subr.mxu0 0.0
    %98 = vmatpush2.xpose.msra.mxu0 0.0
    %99 = vmatprep.mubr.f32.mxu0 %v34
    %100 = vmatmul.mubr.f32.gmra.mxu0 %v33
    %v101 = vpop.f32.mrf.mxu0
    %v102 = vadd.f32 0.0, %v101
    %v103 = vpop.f32.mrf.mxu0
    %104 = vdwg.mxu0
    %v105 = vld [vmem:[#allocation5] sm:$0xff]
    %v106 = vadd.f32 %v105, %v102
    %vm107 = vcmask 64512
    %108 = vst.msk [vmem:[#allocation5] sm:$0xff] %vm107, %v106
    // Predicated region
    $region14: #{tpu_custom_call.1} parent=1 // pred_check
      _
    $region15: #{tpu_custom_call.1} parent=1 // pred_check_branch
      %110 = sbr.rel (0) target = $region17
    $region16: #{tpu_custom_call.1} parent=1 // pred_region
      %s112 = ssub.s32 128, 128
      %113 = vsyncadd [#allocation4], %s112
      %s115 = sshll.u32 [#allocation5], 4
      %s116 = int_to_ptr.vmem [resolvable:$true] %s115
      %118 = dma.vmem_to_hbm [thread:$0]  %s116, 128, %s1, [#allocation4]
    $region17: #{tpu_custom_call.1} parent=1 // pred_fallthru
      _
    // Predicated region
    $region18: #{tpu_custom_call.1} parent=1 // pred_check
      _
    $region19: #{tpu_custom_call.1} parent=1 // pred_check_branch
      %120 = sbr.rel (0) target = $region21
    $region20: #{tpu_custom_call.1} parent=1 // pred_region
      %121 = dma.done [#allocation4], 128
    $region21: #{tpu_custom_call.1} parent=1 // pred_fallthru
      _
    %122 = vsyncpa [#allocation3], 1
    %123 = vsyncpa [#allocation4], 1

</llo_original>
